<compile_context>
chip_gen: v7x
topology: tpu7x:2x2x1
jax: 0.10.0
libtpu: 0.0.40
codegen_flags: <defaults>
</compile_context>

<pallas_src>
import functools

import jax
import jax.numpy as jnp
from jax import lax
from jax.experimental import pallas as pl
from jax.experimental.pallas import tpu as pltpu
import numpy as np


def basic_block_kernel(x_ref, w1_ref, w2_ref, b1_ref, b2_ref, out_ref, *, H):
    # x_ref  : (BM, W*C) f32     packed NHWC activations (BM = block_n * H)
    # w*_ref : (W*C, 3*W*C) bf16 banded conv weights (BN scale folded); the 3
    #                            kh taps are the 3 column groups of width W*C
    # b*_ref : (1, W*C)   f32    folded BN bias, tiled over W
    # out_ref: (BM, W*C)
    BM, WC = x_ref.shape
    x = x_ref[...]                                   # (BM, WC) f32
    zrow = jnp.zeros((1, WC), jnp.float32)

    # Hoisted per-image-row masks (shared by both convs): a row whose
    # row-within-image index is 0 has no "row above" inside its image; a row
    # at H-1 has no "row below".  These also cover the block boundary rows.
    row_in_img = lax.broadcasted_iota(jnp.int32, (BM, WC), 0) % H
    not_first = row_in_img != 0
    not_last = row_in_img != (H - 1)

    def conv3x3_bn_scaled(a_f32, w_ref):
        a = a_f32.astype(jnp.bfloat16)
        # Single MXU matmul: K = W*C = 128, N = 3*W*C = 384, f32 accumulation.
        y = jnp.dot(a, w_ref[...], preferred_element_type=jnp.float32)
        y0 = y[:, 0 * WC:1 * WC]       # kh = 0 tap (needs input row h-1)
        y1 = y[:, 1 * WC:2 * WC]       # kh = 1 tap (row h)
        y2 = y[:, 2 * WC:3 * WC]       # kh = 2 tap (row h+1)
        # kh shifts realized on the outputs (cheap sublane shifts); image-
        # boundary zeros come from the hoisted masks.  The W boundary and kw
        # shifts are already folded into the banded weights.
        top = jnp.where(not_first,
                        jnp.concatenate([zrow, y0[:BM - 1]], axis=0), 0.0)
        bot = jnp.where(not_last,
                        jnp.concatenate([y2[1:], zrow], axis=0), 0.0)
        return top + y1 + bot

    h1 = jnp.maximum(conv3x3_bn_scaled(x, w1_ref) + b1_ref[...], 0.0)   # bn1+relu
    o = conv3x3_bn_scaled(h1, w2_ref) + b2_ref[...] + x                 # bn2+residual
    out_ref[...] = jnp.maximum(o, 0.0).astype(out_ref.dtype)


def basic_block_pallas(x_packed, w1_band, w2_band, b1_packed, b2_packed,
                       block_n=None):
    N, H, WC = x_packed.shape
    if block_n is None:
        # Largest divisor of N keeping the matmul M dimension <= ~256 rows.
        max_rows = max(H, 256)
        block_n = 1
        for d in range(1, N + 1):
            if N % d == 0 and d * H <= max_rows:
                block_n = d
    assert N % block_n == 0
    BM = block_n * H

    x2 = x_packed.reshape(N * H, WC)                 # lane-dense 2D slab
    grid_spec = pltpu.PrefetchScalarGridSpec(
        num_scalar_prefetch=0,
        grid=(N // block_n,),
        in_specs=[
            pl.BlockSpec((BM, WC), lambda n: (n, 0)),
            pl.BlockSpec((WC, 3 * WC), lambda n: (0, 0)),   # grid-invariant
            pl.BlockSpec((WC, 3 * WC), lambda n: (0, 0)),   # grid-invariant
            pl.BlockSpec((1, WC), lambda n: (0, 0)),
            pl.BlockSpec((1, WC), lambda n: (0, 0)),
        ],
        out_specs=pl.BlockSpec((BM, WC), lambda n: (n, 0)),
    )
    out2 = pl.pallas_call(
        functools.partial(basic_block_kernel, H=H),
        out_shape=jax.ShapeDtypeStruct((N * H, WC), x_packed.dtype),
        grid_spec=grid_spec,
        compiler_params=pltpu.CompilerParams(
            dimension_semantics=("parallel",)),
    )(x2, w1_band, w2_band, b1_packed, b2_packed)
    return out2.reshape(N, H, WC)


def fold_bn(gamma, beta, mean, var, eps=1e-5):
    scale = gamma / jnp.sqrt(var + eps)
    bias = beta - mean * scale
    return scale, bias


def build_banded_weight(w_oihw, scale, W):
    """(Cout,Cin,3,3) conv weight + per-channel BN scale ->
    (W*Cin, 3*W*Cout) bf16 banded matrix.  Column group kh holds, for every
    output spatial position wo, the kw taps scattered onto the input spatial
    blocks wo-1, wo, wo+1 (the W-boundary zero padding is implicit)."""
    w = np.asarray(w_oihw, np.float32)
    cout, cin = w.shape[0], w.shape[1]
    w_hwio = (np.transpose(w, (2, 3, 1, 0))
              * np.asarray(scale, np.float32)[None, None, None, :])
    band = np.zeros((W * cin, 3, W * cout), np.float32)
    for kh in range(3):
        for wo in range(W):
            for kw in range(3):
                wi = wo + kw - 1
                if 0 <= wi < W:
                    band[wi * cin:(wi + 1) * cin, kh,
                         wo * cout:(wo + 1) * cout] = w_hwio[kh, kw]
    return jnp.asarray(band.reshape(W * cin, 3 * W * cout), jnp.bfloat16)


def ref_forward_nhwc(x_nhwc, w1_oihw, w2_oihw, s1, b1, s2, b2):
    """Pure-JAX f32 reference (NHWC conv via lax)."""
    dn = lax.conv_dimension_numbers(x_nhwc.shape, (3, 3, 1, 1),
                                    ("NHWC", "HWIO", "NHWC"))
    w1_hwio = jnp.transpose(w1_oihw, (2, 3, 1, 0))
    w2_hwio = jnp.transpose(w2_oihw, (2, 3, 1, 0))
    h = lax.conv_general_dilated(x_nhwc, w1_hwio, (1, 1), ((1, 1), (1, 1)),
                                 dimension_numbers=dn)
    h = jnp.maximum(h * s1 + b1, 0.0)
    o = lax.conv_general_dilated(h, w2_hwio, (1, 1), ((1, 1), (1, 1)),
                                 dimension_numbers=dn)
    o = o * s2 + b2 + x_nhwc
    return jnp.maximum(o, 0.0)


if __name__ == "__main__":
    # BasicBlock(inplanes=8, planes=8, stride=1): C=8, H=W=16 -> W*C = 128.
    N, C, H, W = 2, 8, 16, 16

    key = jax.random.PRNGKey(0)
    kx, kw1, kw2, kg1, kb1, km1, kv1, kg2, kb2, km2, kv2 = jax.random.split(key, 11)

    # PyTorch-style input (NCHW) and conv weights (Cout, Cin, 3, 3).
    x_nchw = jax.random.normal(kx, (N, C, H, W), jnp.float32)
    fan_in = C * 3 * 3
    w1_oihw = jax.random.normal(kw1, (C, C, 3, 3), jnp.float32) / np.sqrt(fan_in)
    w2_oihw = jax.random.normal(kw2, (C, C, 3, 3), jnp.float32) / np.sqrt(fan_in)

    # BatchNorm (eval-mode) parameters.
    g1 = 1.0 + 0.1 * jax.random.normal(kg1, (C,), jnp.float32)
    be1 = 0.1 * jax.random.normal(kb1, (C,), jnp.float32)
    m1 = 0.1 * jax.random.normal(km1, (C,), jnp.float32)
    v1 = 1.0 + 0.1 * jax.random.uniform(kv1, (C,), jnp.float32)
    g2 = 1.0 + 0.1 * jax.random.normal(kg2, (C,), jnp.float32)
    be2 = 0.1 * jax.random.normal(kb2, (C,), jnp.float32)
    m2 = 0.1 * jax.random.normal(km2, (C,), jnp.float32)
    v2 = 1.0 + 0.1 * jax.random.uniform(kv2, (C,), jnp.float32)

    s1, b1 = fold_bn(g1, be1, m1, v1)
    s2, b2 = fold_bn(g2, be2, m2, v2)

    # Lane-dense packing: NCHW -> NHWC -> (N, H, W*C).
    x_nhwc = jnp.transpose(x_nchw, (0, 2, 3, 1))
    x_packed = x_nhwc.reshape(N, H, W * C)

    # Banded conv weights (BN scale folded, bf16) and lane-packed BN biases.
    w1_band = build_banded_weight(w1_oihw, s1, W)
    w2_band = build_banded_weight(w2_oihw, s2, W)
    b1_packed = jnp.tile(b1, W).reshape(1, W * C).astype(jnp.float32)
    b2_packed = jnp.tile(b2, W).reshape(1, W * C).astype(jnp.float32)

    out_packed = basic_block_pallas(x_packed, w1_band, w2_band,
                                    b1_packed, b2_packed)
    out_packed = jax.block_until_ready(out_packed)
    out_nhwc = out_packed.reshape(N, H, W, C)

    ref = ref_forward_nhwc(x_nhwc, w1_oihw, w2_oihw, s1, b1, s2, b2)
    # Tolerance accounts for bf16 matmul operands (f32 accumulation).
    np.testing.assert_allclose(np.asarray(out_nhwc), np.asarray(ref),
                               rtol=5e-2, atol=5e-2)

    print("KERNEL_OK")
</pallas_src>

<mosaic_0001>
module attributes {stable_mosaic.version = 11 : i64} {
  func.func @basic_block_kernel(%arg0: i32, %arg1: memref<32x128xf32, #tpu.memory_space<vmem>>, %arg2: memref<128x384xbf16, #tpu.memory_space<vmem>>, %arg3: memref<128x384xbf16, #tpu.memory_space<vmem>>, %arg4: memref<1x128xf32, #tpu.memory_space<vmem>>, %arg5: memref<1x128xf32, #tpu.memory_space<vmem>>, %arg6: memref<32x128xf32, #tpu.memory_space<vmem>>) attributes {dimension_semantics = [#tpu.dimension_semantics<parallel>], iteration_bounds = array<i64: 1>, scalar_prefetch = 0 : i64, scratch_operands = 0 : i64, tpu.core_type = #tpu.core_type<tc>, window_params = [{transform_indices = @transform_0, window_bounds = array<i64: 32, 128>}, {pipeline_mode = #tpu.pipeline_mode<synchronous>, transform_indices = @transform_1, window_bounds = array<i64: 128, 384>}, {pipeline_mode = #tpu.pipeline_mode<synchronous>, transform_indices = @transform_2, window_bounds = array<i64: 128, 384>}, {pipeline_mode = #tpu.pipeline_mode<synchronous>, transform_indices = @transform_3, window_bounds = array<i64: 1, 128>}, {pipeline_mode = #tpu.pipeline_mode<synchronous>, transform_indices = @transform_4, window_bounds = array<i64: 1, 128>}, {transform_indices = @transform_5, window_bounds = array<i64: 32, 128>}]} {
    %c0 = arith.constant 0 : index
    %c0_0 = arith.constant 0 : index
    %0 = vector.load %arg1[%c0, %c0_0] : memref<32x128xf32, #tpu.memory_space<vmem>>, vector<32x128xf32>
    %cst = arith.constant 0.000000e+00 : f32
    %1 = vector.broadcast %cst : f32 to vector<1x128xf32>
    %2 = tpu.iota {dimensions = array<i32: 0>} : vector<32x128xi32>
    %c16_i32 = arith.constant 16 : i32
    %c0_i32 = arith.constant 0 : i32
    %3 = arith.cmpi eq, %c16_i32, %c0_i32 : i32
    %c1_i32 = arith.constant 1 : i32
    %4 = arith.select %3, %c1_i32, %c16_i32 : i32
    %5 = vector.broadcast %4 : i32 to vector<32x128xi32>
    %6 = arith.remsi %2, %5 : vector<32x128xi32>
    %c0_i32_1 = arith.constant 0 : i32
    %7 = vector.broadcast %c0_i32_1 : i32 to vector<32x128xi32>
    %8 = arith.cmpi ne, %6, %7 : vector<32x128xi32>
    %c0_i32_2 = arith.constant 0 : i32
    %9 = vector.broadcast %c0_i32_2 : i32 to vector<32x128xi32>
    %10 = arith.cmpi slt, %6, %9 : vector<32x128xi32>
    %c0_i32_3 = arith.constant 0 : i32
    %11 = arith.cmpi slt, %4, %c0_i32_3 : i32
    %12 = vector.broadcast %11 : i1 to vector<32x128xi1>
    %13 = vector.broadcast %12 : vector<32x128xi1> to vector<32x128xi1>
    %14 = arith.xori %10, %13 : vector<32x128xi1>
    %15 = arith.andi %14, %8 : vector<32x128xi1>
    %16 = vector.broadcast %4 : i32 to vector<32x128xi32>
    %17 = arith.addi %6, %16 : vector<32x128xi32>
    %18 = arith.select %15, %17, %6 : vector<32x128xi1>, vector<32x128xi32>
    %c0_i32_4 = arith.constant 0 : i32
    %19 = vector.broadcast %c0_i32_4 : i32 to vector<32x128xi32>
    %20 = arith.cmpi ne, %18, %19 : vector<32x128xi32>
    %c15_i32 = arith.constant 15 : i32
    %21 = vector.broadcast %c15_i32 : i32 to vector<32x128xi32>
    %22 = arith.cmpi ne, %18, %21 : vector<32x128xi32>
    %23 = arith.truncf %0 : vector<32x128xf32> to vector<32x128xbf16>
    %c0_5 = arith.constant 0 : index
    %c0_6 = arith.constant 0 : index
    %24 = vector.load %arg2[%c0_5, %c0_6] : memref<128x384xbf16, #tpu.memory_space<vmem>>, vector<128x384xbf16>
    %cst_7 = arith.constant dense<0.000000e+00> : vector<32x384xf32>
    %25 = tpu.matmul %23, %24, %cst_7 {dimension_numbers = #tpu.dot_dimension_numbers<[1], [0], [0], [1], [0, 0, 1, 1], [], []>} : vector<32x128xbf16>, vector<128x384xbf16>, vector<32x384xf32> -> vector<32x384xf32>
    %26 = vector.extract_strided_slice %25 {offsets = [0, 0], sizes = [32, 128], strides = [1, 1]} : vector<32x384xf32> to vector<32x128xf32>
    %27 = vector.extract_strided_slice %25 {offsets = [0, 128], sizes = [32, 128], strides = [1, 1]} : vector<32x384xf32> to vector<32x128xf32>
    %28 = vector.extract_strided_slice %25 {offsets = [0, 256], sizes = [32, 128], strides = [1, 1]} : vector<32x384xf32> to vector<32x128xf32>
    %29 = vector.extract_strided_slice %26 {offsets = [0, 0], sizes = [31, 128], strides = [1, 1]} : vector<32x128xf32> to vector<31x128xf32>
    %30 = tpu.concatenate %1, %29 in 0 : vector<1x128xf32>, vector<31x128xf32> -> vector<32x128xf32>
    %cst_8 = arith.constant 0.000000e+00 : f32
    %31 = vector.broadcast %cst_8 : f32 to vector<32x128xf32>
    %32 = arith.select %20, %30, %31 : vector<32x128xi1>, vector<32x128xf32>
    %33 = vector.extract_strided_slice %28 {offsets = [1, 0], sizes = [31, 128], strides = [1, 1]} : vector<32x128xf32> to vector<31x128xf32>
    %34 = tpu.concatenate %33, %1 in 0 : vector<31x128xf32>, vector<1x128xf32> -> vector<32x128xf32>
    %cst_9 = arith.constant 0.000000e+00 : f32
    %35 = vector.broadcast %cst_9 : f32 to vector<32x128xf32>
    %36 = arith.select %22, %34, %35 : vector<32x128xi1>, vector<32x128xf32>
    %37 = arith.addf %32, %27 : vector<32x128xf32>
    %38 = arith.addf %37, %36 : vector<32x128xf32>
    %c0_10 = arith.constant 0 : index
    %c0_11 = arith.constant 0 : index
    %39 = vector.load %arg4[%c0_10, %c0_11] : memref<1x128xf32, #tpu.memory_space<vmem>>, vector<1x128xf32>
    %40 = vector.broadcast %39 : vector<1x128xf32> to vector<32x128xf32>
    %41 = arith.addf %38, %40 : vector<32x128xf32>
    %cst_12 = arith.constant 0.000000e+00 : f32
    %42 = vector.broadcast %cst_12 : f32 to vector<32x128xf32>
    %43 = arith.maximumf %41, %42 : vector<32x128xf32>
    %44 = arith.truncf %43 : vector<32x128xf32> to vector<32x128xbf16>
    %c0_13 = arith.constant 0 : index
    %c0_14 = arith.constant 0 : index
    %45 = vector.load %arg3[%c0_13, %c0_14] : memref<128x384xbf16, #tpu.memory_space<vmem>>, vector<128x384xbf16>
    %cst_15 = arith.constant dense<0.000000e+00> : vector<32x384xf32>
    %46 = tpu.matmul %44, %45, %cst_15 {dimension_numbers = #tpu.dot_dimension_numbers<[1], [0], [0], [1], [0, 0, 1, 1], [], []>} : vector<32x128xbf16>, vector<128x384xbf16>, vector<32x384xf32> -> vector<32x384xf32>
    %47 = vector.extract_strided_slice %46 {offsets = [0, 0], sizes = [32, 128], strides = [1, 1]} : vector<32x384xf32> to vector<32x128xf32>
    %48 = vector.extract_strided_slice %46 {offsets = [0, 128], sizes = [32, 128], strides = [1, 1]} : vector<32x384xf32> to vector<32x128xf32>
    %49 = vector.extract_strided_slice %46 {offsets = [0, 256], sizes = [32, 128], strides = [1, 1]} : vector<32x384xf32> to vector<32x128xf32>
    %50 = vector.extract_strided_slice %47 {offsets = [0, 0], sizes = [31, 128], strides = [1, 1]} : vector<32x128xf32> to vector<31x128xf32>
    %51 = tpu.concatenate %1, %50 in 0 : vector<1x128xf32>, vector<31x128xf32> -> vector<32x128xf32>
    %cst_16 = arith.constant 0.000000e+00 : f32
    %52 = vector.broadcast %cst_16 : f32 to vector<32x128xf32>
    %53 = arith.select %20, %51, %52 : vector<32x128xi1>, vector<32x128xf32>
    %54 = vector.extract_strided_slice %49 {offsets = [1, 0], sizes = [31, 128], strides = [1, 1]} : vector<32x128xf32> to vector<31x128xf32>
    %55 = tpu.concatenate %54, %1 in 0 : vector<31x128xf32>, vector<1x128xf32> -> vector<32x128xf32>
    %cst_17 = arith.constant 0.000000e+00 : f32
    %56 = vector.broadcast %cst_17 : f32 to vector<32x128xf32>
    %57 = arith.select %22, %55, %56 : vector<32x128xi1>, vector<32x128xf32>
    %58 = arith.addf %53, %48 : vector<32x128xf32>
    %59 = arith.addf %58, %57 : vector<32x128xf32>
    %c0_18 = arith.constant 0 : index
    %c0_19 = arith.constant 0 : index
    %60 = vector.load %arg5[%c0_18, %c0_19] : memref<1x128xf32, #tpu.memory_space<vmem>>, vector<1x128xf32>
    %61 = vector.broadcast %60 : vector<1x128xf32> to vector<32x128xf32>
    %62 = arith.addf %59, %61 : vector<32x128xf32>
    %63 = arith.addf %62, %0 : vector<32x128xf32>
    %cst_20 = arith.constant 0.000000e+00 : f32
    %64 = vector.broadcast %cst_20 : f32 to vector<32x128xf32>
    %65 = arith.maximumf %63, %64 : vector<32x128xf32>
    %c0_21 = arith.constant 0 : index
    %c0_22 = arith.constant 0 : index
    %66 = vector.load %arg6[%c0_21, %c0_22] : memref<32x128xf32, #tpu.memory_space<vmem>>, vector<32x128xf32>
    tpu.vector_store %arg6[%c0_21, %c0_22], %65 {strides = array<i32>} : memref<32x128xf32, #tpu.memory_space<vmem>>, vector<32x128xf32>,
    return
  }
  func.func @transform_0(%arg0: i32) -> (i32, i32) {
    %c0_i32 = arith.constant 0 : i32
    %c0_i32_0 = arith.constant 0 : i32
    return %arg0, %c0_i32 : i32, i32
  }
  func.func @transform_1(%arg0: i32) -> (i32, i32) {
    %c0_i32 = arith.constant 0 : i32
    %c0_i32_0 = arith.constant 0 : i32
    %c0_i32_1 = arith.constant 0 : i32
    return %c0_i32, %c0_i32_0 : i32, i32
  }
  func.func @transform_2(%arg0: i32) -> (i32, i32) {
    %c0_i32 = arith.constant 0 : i32
    %c0_i32_0 = arith.constant 0 : i32
    %c0_i32_1 = arith.constant 0 : i32
    return %c0_i32, %c0_i32_0 : i32, i32
  }
  func.func @transform_3(%arg0: i32) -> (i32, i32) {
    %c0_i32 = arith.constant 0 : i32
    %c0_i32_0 = arith.constant 0 : i32
    %c0_i32_1 = arith.constant 0 : i32
    return %c0_i32, %c0_i32_0 : i32, i32
  }
  func.func @transform_4(%arg0: i32) -> (i32, i32) {
    %c0_i32 = arith.constant 0 : i32
    %c0_i32_0 = arith.constant 0 : i32
    %c0_i32_1 = arith.constant 0 : i32
    return %c0_i32, %c0_i32_0 : i32, i32
  }
  func.func @transform_5(%arg0: i32) -> (i32, i32) {
    %c0_i32 = arith.constant 0 : i32
    %c0_i32_0 = arith.constant 0 : i32
    return %arg0, %c0_i32 : i32, i32
  }
}

</mosaic_0001>

<llo_original>
// kernel: tpu_custom_call.1
$region0: #{tpu_custom_call.1}
  #allocation0 [shape = 'u32[]', space=smem, size = 0x4, offset = 0x4, fixed_abs, tag = 'smem constant byte address 0x4 - core index']
  #allocation1 [shape = 'u32[144,128]{1,0:T(1,128)}', space=vmem, size = 0x12000, scoped, tag = 'internal scratch']
  %s0 = inlined_call_operand.hbm [shape: f32[32,128], index: 0, kind: input, shape index: {}]
  %s1 = inlined_call_operand.hbm [shape: bf16[128,384], index: 1, kind: input, shape index: {}]
  %s2 = inlined_call_operand.hbm [shape: bf16[128,384], index: 2, kind: input, shape index: {}]
  %s3 = inlined_call_operand.vmem [shape: f32[1,128], index: 3, kind: input, shape index: {}]
  %s4 = inlined_call_operand.vmem [shape: f32[1,128], index: 4, kind: input, shape index: {}]
  %s5 = inlined_call_operand.hbm [shape: f32[32,128], index: 5, kind: output, shape index: {}]
  %s6 = sld [smem:[#allocation0]]
  $region42: #{tpu_custom_call.1} parent=0
    _
  %s8 = ssub.s32 1, %s6
  %s9 = scalar_select 0, %s8, %s6
  $region1: #{tpu_custom_call.1} parent=0
    #allocation2 [shape = 'u8[16384]{0}', space=vmem, size = 0x4000, scoped, tag = 'input window, operand 0, single buffered']
    #allocation3 [shape = 's32[1]{0}', space=sflag, size = 0x4, scoped, tag = 'scoped memory for tpu_custom_call.1']
    #allocation4 [shape = 's32[1]{0}', space=sflag, size = 0x4, scoped, tag = 'scoped memory for tpu_custom_call.1']
    #allocation5 [shape = 'u8[98304]{0}', space=vmem, size = 0x18000, scoped, tag = 'input window, operand 1, single buffered']
    #allocation6 [shape = 's32[1]{0}', space=sflag, size = 0x4, scoped, tag = 'scoped memory for tpu_custom_call.1']
    #allocation7 [shape = 'u8[98304]{0}', space=vmem, size = 0x18000, scoped, tag = 'input window, operand 2, single buffered']
    #allocation8 [shape = 'u8[16384]{0}', space=vmem, size = 0x4000, scoped, tag = 'output window, operand 0, single buffered']
    %10 = vsyncpa [#allocation3], 0
    %11 = vsyncpa [#allocation6], 0
    %12 = vsyncpa [#allocation4], 0
    // Predicated region
    $region2: #{tpu_custom_call.1} parent=1 // pred_check
      _
    $region3: #{tpu_custom_call.1} parent=1 // pred_check_branch
      %14 = sbr.rel (0) target = $region5
    $region4: #{tpu_custom_call.1} parent=1 // pred_region
      %s16 = ssub.s32 512, 512
      %17 = vsyncadd [#allocation3], %s16
      %s18 = sshll.u32 [#allocation2], 4
      %s19 = int_to_ptr.vmem [resolvable:$true] %s18
      %24 = dma.hbm_to_vmem [thread:$0]  %s0, 512, %s19, [#allocation3], 128, 128, 8
    $region5: #{tpu_custom_call.1} parent=1 // pred_fallthru
      _
    // Predicated region
    $region6: #{tpu_custom_call.1} parent=1 // pred_check
      _
    $region7: #{tpu_custom_call.1} parent=1 // pred_check_branch
      %26 = sbr.rel (0) target = $region9
    $region8: #{tpu_custom_call.1} parent=1 // pred_region
      %s28 = ssub.s32 3072, 3072
      %29 = vsyncadd [#allocation6], %s28
      %s30 = sshll.u32 [#allocation5], 4
      %s31 = int_to_ptr.vmem [resolvable:$true] %s30
      %36 = dma.hbm_to_vmem [thread:$0]  %s1, 3072, %s31, [#allocation6], 192, 192, 12
    $region9: #{tpu_custom_call.1} parent=1 // pred_fallthru
      _
    // Predicated region
    $region10: #{tpu_custom_call.1} parent=1 // pred_check
      _
    $region11: #{tpu_custom_call.1} parent=1 // pred_check_branch
      %38 = sbr.rel (0) target = $region13
    $region12: #{tpu_custom_call.1} parent=1 // pred_region
      %s40 = ssub.s32 3072, 3072
      %41 = vsyncadd [#allocation6], %s40
      %s42 = sshll.u32 [#allocation7], 4
      %s43 = int_to_ptr.vmem [resolvable:$true] %s42
      %48 = dma.hbm_to_vmem [thread:$0]  %s2, 3072, %s43, [#allocation6], 192, 192, 12
    $region13: #{tpu_custom_call.1} parent=1 // pred_fallthru
      _
    // Predicated region
    $region14: #{tpu_custom_call.1} parent=1 // pred_check
      _
    $region15: #{tpu_custom_call.1} parent=1 // pred_check_branch
      %50 = sbr.rel (0) target = $region17
    $region16: #{tpu_custom_call.1} parent=1 // pred_region
      _
    $region17: #{tpu_custom_call.1} parent=1 // pred_fallthru
      _
    // Predicated region
    $region18: #{tpu_custom_call.1} parent=1 // pred_check
      _
    $region19: #{tpu_custom_call.1} parent=1 // pred_check_branch
      %52 = sbr.rel (0) target = $region21
    $region20: #{tpu_custom_call.1} parent=1 // pred_region
      _
    $region21: #{tpu_custom_call.1} parent=1 // pred_fallthru
      _
    // Predicated region
    $region22: #{tpu_custom_call.1} parent=1 // pred_check
      _
    $region23: #{tpu_custom_call.1} parent=1 // pred_check_branch
      %54 = sbr.rel (0) target = $region25
    $region24: #{tpu_custom_call.1} parent=1 // pred_region
      %55 = dma.done [#allocation3], 512
    $region25: #{tpu_custom_call.1} parent=1 // pred_fallthru
      _
    // Predicated region
    $region26: #{tpu_custom_call.1} parent=1 // pred_check
      _
    $region27: #{tpu_custom_call.1} parent=1 // pred_check_branch
      %57 = sbr.rel (0) target = $region29
    $region28: #{tpu_custom_call.1} parent=1 // pred_region
      %58 = dma.done [#allocation6], 3072
    $region29: #{tpu_custom_call.1} parent=1 // pred_fallthru
      _
    // Predicated region
    $region30: #{tpu_custom_call.1} parent=1 // pred_check
      _
    $region31: #{tpu_custom_call.1} parent=1 // pred_check_branch
      %60 = sbr.rel (0) target = $region33
    $region32: #{tpu_custom_call.1} parent=1 // pred_region
      %61 = dma.done [#allocation6], 3072
    $region33: #{tpu_custom_call.1} parent=1 // pred_fallthru
      _
    %v63 = vld [vmem:[#allocation2] sm:$0xff]
    %v64 = vld [vmem:[#allocation2 + $0x8] sm:$0xff]
    %v65 = vld [vmem:[#allocation2 + $0x10] sm:$0xff]
    %v66 = vld [vmem:[#allocation2 + $0x18] sm:$0xff]
    %v67 = vlaneseq
    %v68 = vshrl.u32 %v67, 7
    %v69 = vadd.s32 %v68, 8
    %v70 = vadd.s32 %v68, 16
    %v71 = vadd.s32 %v68, 24
    %vm72 = vcmp.lt.s32.totalorder %v68, 0
    %v73 = vsub.s32 0, %v68
    %v74 = vsel %vm72, %v73, %v68
    %v75 = vshrl.u32 %v74, 4
    %v76 = vand.u32 %v74, 15
    %v77 = vsub.s32 0, %v76
    %v78 = vsel %vm72, %v77, %v76
    %vm79 = vcmp.lt.s32.totalorder %v69, 0
    %v80 = vsub.s32 0, %v69
    %v81 = vsel %vm79, %v80, %v69
    %v82 = vshrl.u32 %v81, 4
    %v83 = vand.u32 %v81, 15
    %v84 = vsub.s32 0, %v83
    %v85 = vsel %vm79, %v84, %v83
    %vm86 = vcmp.lt.s32.totalorder %v70, 0
    %v87 = vsub.s32 0, %v70
    %v88 = vsel %vm86, %v87, %v70
    %v89 = vshrl.u32 %v88, 4
    %v90 = vand.u32 %v88, 15
    %v91 = vsub.s32 0, %v90
    %v92 = vsel %vm86, %v91, %v90
    %vm93 = vcmp.lt.s32.totalorder %v71, 0
    %v94 = vsub.s32 0, %v71
    %v95 = vsel %vm93, %v94, %v71
    %v96 = vshrl.u32 %v95, 4
    %v97 = vand.u32 %v95, 15
    %v98 = vsub.s32 0, %v97
    %v99 = vsel %vm93, %v98, %v97
    %vm100 = vcmp.ne.s32.totalorder %v78, 0
    %vm101 = vcmp.ne.s32.totalorder %v85, 0
    %vm102 = vcmp.ne.s32.totalorder %v92, 0
    %vm103 = vcmp.ne.s32.totalorder %v99, 0
    %vm104 = vcmp.lt.s32.totalorder %v78, 0
    %vm105 = vcmp.lt.s32.totalorder %v85, 0
    %vm106 = vcmp.lt.s32.totalorder %v92, 0
    %vm107 = vcmp.lt.s32.totalorder %v99, 0
    %vm108 = vmand %vm104, %vm100
    %vm109 = vmand %vm105, %vm101
    %vm110 = vmand %vm106, %vm102
    %vm111 = vmand %vm107, %vm103
    %v112 = vadd.s32 %v78, 16
    %v113 = vadd.s32 %v85, 16
    %v114 = vadd.s32 %v92, 16
    %v115 = vadd.s32 %v99, 16
    %v116 = vsel %vm108, %v112, %v78
    %v117 = vsel %vm109, %v113, %v85
    %v118 = vsel %vm110, %v114, %v92
    %v119 = vsel %vm111, %v115, %v99
    %vm120 = vcmp.ne.s32.totalorder %v116, 0
    %vm121 = vcmp.ne.s32.totalorder %v117, 0
    %vm122 = vcmp.ne.s32.totalorder %v118, 0
    %vm123 = vcmp.ne.s32.totalorder %v119, 0
    %vm124 = vcmp.ne.s32.totalorder %v116, 15
    %vm125 = vcmp.ne.s32.totalorder %v117, 15
    %vm126 = vcmp.ne.s32.totalorder %v118, 15
    %vm127 = vcmp.ne.s32.totalorder %v119, 15
    %v128 = vpack.c.bf16 %v64, %v63
    %v129 = vpack.c.bf16 %v66, %v65
    %v130 = vld [vmem:[#allocation5] sm:$0xff]
    %v131 = vld [vmem:[#allocation5 + $0x8] sm:$0xf]
    %v132 = vld [vmem:[#allocation5 + $0xc] sm:$0xff]
    %v133 = vld [vmem:[#allocation5 + $0x14] sm:$0xf]
    %v134 = vld [vmem:[#allocation5 + $0x18] sm:$0xff]
    %v135 = vld [vmem:[#allocation5 + $0x20] sm:$0xf]
    %v136 = vld [vmem:[#allocation5 + $0x24] sm:$0xff]
    %v137 = vld [vmem:[#allocation5 + $0x2c] sm:$0xf]
    %v138 = vld [vmem:[#allocation5 + $0x30] sm:$0xff]
    %v139 = vld [vmem:[#allocation5 + $0x38] sm:$0xf]
    %v140 = vld [vmem:[#allocation5 + $0x3c] sm:$0xff]
    %v141 = vld [vmem:[#allocation5 + $0x44] sm:$0xf]
    %v142 = vld [vmem:[#allocation5 + $0x48] sm:$0xff]
    %v143 = vld [vmem:[#allocation5 + $0x50] sm:$0xf]
    %v144 = vld [vmem:[#allocation5 + $0x54] sm:$0xff]
    %v145 = vld [vmem:[#allocation5 + $0x5c] sm:$0xf]
    %v146 = vld [vmem:[#allocation5 + $0x60] sm:$0xff]
    %v147 = vld [vmem:[#allocation5 + $0x68] sm:$0xf]
    %v148 = vld [vmem:[#allocation5 + $0x6c] sm:$0xff]
    %v149 = vld [vmem:[#allocation5 + $0x74] sm:$0xf]
    %v150 = vld [vmem:[#allocation5 + $0x78] sm:$0xff]
    %v151 = vld [vmem:[#allocation5 + $0x80] sm:$0xf]
    %v152 = vld [vmem:[#allocation5 + $0x84] sm:$0xff]
    %v153 = vld [vmem:[#allocation5 + $0x8c] sm:$0xf]
    %v154 = vld [vmem:[#allocation5 + $0x90] sm:$0xff]
    %v155 = vld [vmem:[#allocation5 + $0x98] sm:$0xf]
    %v156 = vld [vmem:[#allocation5 + $0x9c] sm:$0xff]
    %v157 = vld [vmem:[#allocation5 + $0xa4] sm:$0xf]
    %v158 = vld [vmem:[#allocation5 + $0xa8] sm:$0xff]
    %v159 = vld [vmem:[#allocation5 + $0xb0] sm:$0xf]
    %v160 = vld [vmem:[#allocation5 + $0xb4] sm:$0xff]
    %v161 = vld [vmem:[#allocation5 + $0xbc] sm:$0xf]
    %v194 = vunpack.c.l.b16 %v130
    %v195 = vunpack.c.h.b16 %v130
    %v196 = vunpack.c.l.b16 %v131
    %v197 = vunpack.c.l.b16 %v132
    %v198 = vunpack.c.h.b16 %v132
    %v199 = vunpack.c.l.b16 %v133
    %v200 = vunpack.c.l.b16 %v134
    %v201 = vunpack.c.h.b16 %v134
    %v202 = vunpack.c.l.b16 %v135
    %v203 = vunpack.c.l.b16 %v136
    %v204 = vunpack.c.h.b16 %v136
    %v205 = vunpack.c.l.b16 %v137
    %v206 = vunpack.c.l.b16 %v138
    %v207 = vunpack.c.h.b16 %v138
    %v208 = vunpack.c.l.b16 %v139
    %v209 = vunpack.c.l.b16 %v140
    %v210 = vunpack.c.h.b16 %v140
    %v211 = vunpack.c.l.b16 %v141
    %v212 = vunpack.c.l.b16 %v142
    %v213 = vunpack.c.h.b16 %v142
    %v214 = vunpack.c.l.b16 %v143
    %v215 = vunpack.c.l.b16 %v144
    %v216 = vunpack.c.h.b16 %v144
    %v217 = vunpack.c.l.b16 %v145
    %v218 = vunpack.c.l.b16 %v146
    %v219 = vunpack.c.h.b16 %v146
    %v220 = vunpack.c.l.b16 %v147
    %v221 = vunpack.c.l.b16 %v148
    %v222 = vunpack.c.h.b16 %v148
    %v223 = vunpack.c.l.b16 %v149
    %v224 = vunpack.c.l.b16 %v150
    %v225 = vunpack.c.h.b16 %v150
    %v226 = vunpack.c.l.b16 %v151
    %v227 = vunpack.c.l.b16 %v152
    %v228 = vunpack.c.h.b16 %v152
    %v229 = vunpack.c.l.b16 %v153
    %v230 = vunpack.c.l.b16 %v154
    %v231 = vunpack.c.h.b16 %v154
    %v232 = vunpack.c.l.b16 %v155
    %v233 = vunpack.c.l.b16 %v156
    %v234 = vunpack.c.h.b16 %v156
    %v235 = vunpack.c.l.b16 %v157
    %v236 = vunpack.c.l.b16 %v158
    %v237 = vunpack.c.h.b16 %v158
    %v238 = vunpack.c.l.b16 %v159
    %v239 = vunpack.c.l.b16 %v160
    %v240 = vunpack.c.h.b16 %v160
    %v241 = vunpack.c.l.b16 %v161
    %v242 = vpack.c.b16 %v197, %v194
    %v243 = vpack.c.b16 %v198, %v195
    %v244 = vpack.c.b16 %v199, %v196
    %v245 = vpack.c.b16 %v203, %v200
    %v246 = vpack.c.b16 %v204, %v201
    %v247 = vpack.c.b16 %v205, %v202
    %v248 = vpack.c.b16 %v209, %v206
    %v249 = vpack.c.b16 %v210, %v207
    %v250 = vpack.c.b16 %v211, %v208
    %v251 = vpack.c.b16 %v215, %v212
    %v252 = vpack.c.b16 %v216, %v213
    %v253 = vpack.c.b16 %v217, %v214
    %v254 = vpack.c.b16 %v221, %v218
    %v255 = vpack.c.b16 %v222, %v219
    %v256 = vpack.c.b16 %v223, %v220
    %v257 = vpack.c.b16 %v227, %v224
    %v258 = vpack.c.b16 %v228, %v225
    %v259 = vpack.c.b16 %v229, %v226
    %v260 = vpack.c.b16 %v233, %v230
    %v261 = vpack.c.b16 %v234, %v231
    %v262 = vpack.c.b16 %v235, %v232
    %v263 = vpack.c.b16 %v239, %v236
    %v264 = vpack.c.b16 %v240, %v237
    %v265 = vpack.c.b16 %v241, %v238
    %290 = vmatprep.subr.bf16.mxu0 %v243
    %291 = vmatpush1.bf16.msra.mxu0 %v242
    %292 = vmatprep.subr.bf16.mxu0 %v246
    %293 = vmatpush1.bf16.msra.mxu0 %v245
    %294 = vmatprep.subr.bf16.mxu0 %v249
    %295 = vmatpush1.bf16.msra.mxu0 %v248
    %296 = vmatprep.subr.bf16.mxu0 %v252
    %297 = vmatpush1.bf16.msra.mxu0 %v251
    %298 = vmatprep.subr.bf16.mxu0 %v255
    %299 = vmatpush1.bf16.msra.mxu0 %v254
    %300 = vmatprep.subr.bf16.mxu0 %v258
    %301 = vmatpush1.bf16.msra.mxu0 %v257
    %302 = vmatprep.subr.bf16.mxu0 %v261
    %303 = vmatpush1.bf16.msra.mxu0 %v260
    %304 = vmatprep.subr.bf16.mxu0 %v264
    %305 = vmatpush1.bf16.msra.mxu0 %v263
    %306 = vmatprep.subr.bf16.mxu0 0
    %307 = vmatpush1.bf16.msra.mxu0 0
    %308 = vmatprep.subr.bf16.mxu0 0
    %309 = vmatpush1.bf16.msra.mxu0 0
    %310 = vmatprep.subr.bf16.mxu0 0
    %311 = vmatpush1.bf16.msra.mxu0 0
    %312 = vmatprep.subr.bf16.mxu0 0
    %313 = vmatpush1.bf16.msra.mxu0 0
    %314 = vmatprep.subr.bf16.mxu0 0
    %315 = vmatpush1.bf16.msra.mxu0 0
    %316 = vmatprep.subr.bf16.mxu0 0
    %317 = vmatpush1.bf16.msra.mxu0 0
    %318 = vmatprep.subr.bf16.mxu0 0
    %319 = vmatpush1.bf16.msra.mxu0 0
    %320 = vmatprep.subr.bf16.mxu0 0
    %321 = vmatpush1.bf16.msra.mxu0 0
    %322 = vmatprep.mubr.bf16.mxu0 0
    %323 = vmatmul.mubr.bf16.gmra.mrb[0].mxu0 %v128
    %v324 = vpop.f32.mrb[0].mxu0
    %v325 = vadd.f32 0.0, %v324
    %v326 = vpop.f32.mrb[0].mxu0
    %v327 = vadd.f32 0.0, %v326
    %v328 = vpop.f32.mrb[0].mxu0
    %v329 = vadd.f32 0.0, %v328
    %v330 = vpop.f32.mrb[0].mxu0
    %v331 = vadd.f32 0.0, %v330
    %332 = vmatprep.mubr.bf16.mxu0 0
    %333 = vmatmul.mubr.bf16.gmra.mrb[0].mxu0 %v129
    %v334 = vpop.f32.mrb[0].mxu0
    %v335 = vadd.f32 0.0, %v334
    %v336 = vpop.f32.mrb[0].mxu0
    %v337 = vadd.f32 0.0, %v336
    %v338 = vpop.f32.mrb[0].mxu0
    %v339 = vadd.f32 0.0, %v338
    %v340 = vpop.f32.mrb[0].mxu0
    %v341 = vadd.f32 0.0, %v340
    %342 = vdwg.mxu0
    %343 = vmatprep.subr.bf16.mxu0 0
    %344 = vmatpush1.bf16.msra.mxu0 %v244
    %345 = vmatprep.subr.bf16.mxu0 0
    %346 = vmatpush1.bf16.msra.mxu0 %v247
    %347 = vmatprep.subr.bf16.mxu0 0
    %348 = vmatpush1.bf16.msra.mxu0 %v250
    %349 = vmatprep.subr.bf16.mxu0 0
    %350 = vmatpush1.bf16.msra.mxu0 %v253
    %351 = vmatprep.subr.bf16.mxu0 0
    %352 = vmatpush1.bf16.msra.mxu0 %v256
    %353 = vmatprep.subr.bf16.mxu0 0
    %354 = vmatpush1.bf16.msra.mxu0 %v259
    %355 = vmatprep.subr.bf16.mxu0 0
    %356 = vmatpush1.bf16.msra.mxu0 %v262
    %357 = vmatprep.subr.bf16.mxu0 0
    %358 = vmatpush1.bf16.msra.mxu0 %v265
    %359 = vmatprep.subr.bf16.mxu0 0
    %360 = vmatpush1.bf16.msra.mxu0 0
    %361 = vmatprep.subr.bf16.mxu0 0
    %362 = vmatpush1.bf16.msra.mxu0 0
    %363 = vmatprep.subr.bf16.mxu0 0
    %364 = vmatpush1.bf16.msra.mxu0 0
    %365 = vmatprep.subr.bf16.mxu0 0
    %366 = vmatpush1.bf16.msra.mxu0 0
    %367 = vmatprep.subr.bf16.mxu0 0
    %368 = vmatpush1.bf16.msra.mxu0 0
    %369 = vmatprep.subr.bf16.mxu0 0
    %370 = vmatpush1.bf16.msra.mxu0 0
    %371 = vmatprep.subr.bf16.mxu0 0
    %372 = vmatpush1.bf16.msra.mxu0 0
    %373 = vmatprep.subr.bf16.mxu0 0
    %374 = vmatpush1.bf16.msra.mxu0 0
    %375 = vmatprep.mubr.bf16.mxu0 0
    %376 = vmatmul.mubr.bf16.gmra.mrb[0].mxu0 %v128
    %v377 = vpop.f32.mrb[0].mxu0
    %v378 = vadd.f32 0.0, %v377
    %v379 = vpop.f32.mrb[0].mxu0
    %v380 = vpop.f32.mrb[0].mxu0
    %v381 = vadd.f32 0.0, %v380
    %v382 = vpop.f32.mrb[0].mxu0
    %383 = vmatprep.mubr.bf16.mxu0 0
    %384 = vmatmul.mubr.bf16.gmra.mrb[0].mxu0 %v129
    %v385 = vpop.f32.mrb[0].mxu0
    %v386 = vadd.f32 0.0, %v385
    %v387 = vpop.f32.mrb[0].mxu0
    %v388 = vpop.f32.mrb[0].mxu0
    %v389 = vadd.f32 0.0, %v388
    %v390 = vpop.f32.mrb[0].mxu0
    %391 = vdwg.mxu0
    %vm396 = vcmask 1040384
    %v397 = vrot.slane %v325, 7
    %v398 = vrot.slane %v329, 7
    %v399 = vsel %vm396, %v397, %v398
    %v400 = vrot.slane %v335, 7
    %v401 = vsel %vm396, %v398, %v400
    %v402 = vrot.slane %v339, 7
    %v403 = vsel %vm396, %v400, %v402
    %v408 = vsel %vm396, 0.0, %v397
    %v409 = vsel %vm120, %v408, 0.0
    %v410 = vsel %vm121, %v399, 0.0
    %v411 = vsel %vm122, %v401, 0.0
    %v412 = vsel %vm123, %v403, 0.0
    %vm417 = vcmask 1046528
    %v418 = vrot.slane %v378, 1
    %v419 = vrot.slane %v381, 1
    %v420 = vsel %vm417, %v418, %v419
    %v421 = vrot.slane %v386, 1
    %v422 = vsel %vm417, %v419, %v421
    %v423 = vrot.slane %v389, 1
    %v424 = vsel %vm417, %v421, %v423
    %v429 = vsel %vm417, %v423, 0.0
    %v430 = vsel %vm124, %v420, 0.0
    %v431 = vsel %vm125, %v422, 0.0
    %v432 = vsel %vm126, %v424, 0.0
    %v433 = vsel %vm127, %v429, 0.0
    %v434 = vadd.f32 %v409, %v327
    %v435 = vadd.f32 %v410, %v331
    %v436 = vadd.f32 %v411, %v337
    %v437 = vadd.f32 %v412, %v341
    %v438 = vadd.f32 %v434, %v430
    %v439 = vadd.f32 %v435, %v431
    %v440 = vadd.f32 %v436, %v432
    %v441 = vadd.f32 %v437, %v433
    %v442 = vld [vmem:[%s3] sm:$0x1]
    %v444 = vlaneseq
    %v445 = vshrl.u32 %v444, 7
    %v446 = vsub.s32 0, %v445
    %v447 = vrot.slane %v442, %v446
    %v449 = vadd.f32 %v438, %v447
    %v450 = vadd.f32 %v439, %v447
    %v451 = vadd.f32 %v440, %v447
    %v452 = vadd.f32 %v441, %v447
    %v453 = vmax.f32 %v449, 0.0
    %v454 = vmax.f32 %v450, 0.0
    %v455 = vmax.f32 %v451, 0.0
    %v456 = vmax.f32 %v452, 0.0
    %v457 = vpack.c.bf16 %v454, %v453
    %v458 = vpack.c.bf16 %v456, %v455
    %v459 = vld [vmem:[#allocation7] sm:$0xff]
    %v460 = vld [vmem:[#allocation7 + $0x8] sm:$0xf]
    %v461 = vld [vmem:[#allocation7 + $0xc] sm:$0xff]
    %v462 = vld [vmem:[#allocation7 + $0x14] sm:$0xf]
    %v463 = vld [vmem:[#allocation7 + $0x18] sm:$0xff]
    %v464 = vld [vmem:[#allocation7 + $0x20] sm:$0xf]
    %v465 = vld [vmem:[#allocation7 + $0x24] sm:$0xff]
    %v466 = vld [vmem:[#allocation7 + $0x2c] sm:$0xf]
    %v467 = vld [vmem:[#allocation7 + $0x30] sm:$0xff]
    %v468 = vld [vmem:[#allocation7 + $0x38] sm:$0xf]
    %v469 = vld [vmem:[#allocation7 + $0x3c] sm:$0xff]
    %v470 = vld [vmem:[#allocation7 + $0x44] sm:$0xf]
    %v471 = vld [vmem:[#allocation7 + $0x48] sm:$0xff]
    %v472 = vld [vmem:[#allocation7 + $0x50] sm:$0xf]
    %v473 = vld [vmem:[#allocation7 + $0x54] sm:$0xff]
    %v474 = vld [vmem:[#allocation7 + $0x5c] sm:$0xf]
    %v475 = vld [vmem:[#allocation7 + $0x60] sm:$0xff]
    %v476 = vld [vmem:[#allocation7 + $0x68] sm:$0xf]
    %v477 = vld [vmem:[#allocation7 + $0x6c] sm:$0xff]
    %v478 = vld [vmem:[#allocation7 + $0x74] sm:$0xf]
    %v479 = vld [vmem:[#allocation7 + $0x78] sm:$0xff]
    %v480 = vld [vmem:[#allocation7 + $0x80] sm:$0xf]
    %v481 = vld [vmem:[#allocation7 + $0x84] sm:$0xff]
    %v482 = vld [vmem:[#allocation7 + $0x8c] sm:$0xf]
    %v483 = vld [vmem:[#allocation7 + $0x90] sm:$0xff]
    %v484 = vld [vmem:[#allocation7 + $0x98] sm:$0xf]
    %v485 = vld [vmem:[#allocation7 + $0x9c] sm:$0xff]
    %v486 = vld [vmem:[#allocation7 + $0xa4] sm:$0xf]
    %v487 = vld [vmem:[#allocation7 + $0xa8] sm:$0xff]
    %v488 = vld [vmem:[#allocation7 + $0xb0] sm:$0xf]
    %v489 = vld [vmem:[#allocation7 + $0xb4] sm:$0xff]
    %v490 = vld [vmem:[#allocation7 + $0xbc] sm:$0xf]
    %v523 = vunpack.c.l.b16 %v459
    %v524 = vunpack.c.h.b16 %v459
    %v525 = vunpack.c.l.b16 %v460
    %v526 = vunpack.c.l.b16 %v461
    %v527 = vunpack.c.h.b16 %v461
    %v528 = vunpack.c.l.b16 %v462
    %v529 = vunpack.c.l.b16 %v463
    %v530 = vunpack.c.h.b16 %v463
    %v531 = vunpack.c.l.b16 %v464
    %v532 = vunpack.c.l.b16 %v465
    %v533 = vunpack.c.h.b16 %v465
    %v534 = vunpack.c.l.b16 %v466
    %v535 = vunpack.c.l.b16 %v467
    %v536 = vunpack.c.h.b16 %v467
    %v537 = vunpack.c.l.b16 %v468
    %v538 = vunpack.c.l.b16 %v469
    %v539 = vunpack.c.h.b16 %v469
    %v540 = vunpack.c.l.b16 %v470
    %v541 = vunpack.c.l.b16 %v471
    %v542 = vunpack.c.h.b16 %v471
    %v543 = vunpack.c.l.b16 %v472
    %v544 = vunpack.c.l.b16 %v473
    %v545 = vunpack.c.h.b16 %v473
    %v546 = vunpack.c.l.b16 %v474
    %v547 = vunpack.c.l.b16 %v475
    %v548 = vunpack.c.h.b16 %v475
    %v549 = vunpack.c.l.b16 %v476
    %v550 = vunpack.c.l.b16 %v477
    %v551 = vunpack.c.h.b16 %v477
    %v552 = vunpack.c.l.b16 %v478
    %v553 = vunpack.c.l.b16 %v479
    %v554 = vunpack.c.h.b16 %v479
    %v555 = vunpack.c.l.b16 %v480
    %v556 = vunpack.c.l.b16 %v481
    %v557 = vunpack.c.h.b16 %v481
    %v558 = vunpack.c.l.b16 %v482
    %v559 = vunpack.c.l.b16 %v483
    %v560 = vunpack.c.h.b16 %v483
    %v561 = vunpack.c.l.b16 %v484
    %v562 = vunpack.c.l.b16 %v485
    %v563 = vunpack.c.h.b16 %v485
    %v564 = vunpack.c.l.b16 %v486
    %v565 = vunpack.c.l.b16 %v487
    %v566 = vunpack.c.h.b16 %v487
    %v567 = vunpack.c.l.b16 %v488
    %v568 = vunpack.c.l.b16 %v489
    %v569 = vunpack.c.h.b16 %v489
    %v570 = vunpack.c.l.b16 %v490
    %v571 = vpack.c.b16 %v526, %v523
    %v572 = vpack.c.b16 %v527, %v524
    %v573 = vpack.c.b16 %v528, %v525
    %v574 = vpack.c.b16 %v532, %v529
    %v575 = vpack.c.b16 %v533, %v530
    %v576 = vpack.c.b16 %v534, %v531
    %v577 = vpack.c.b16 %v538, %v535
    %v578 = vpack.c.b16 %v539, %v536
    %v579 = vpack.c.b16 %v540, %v537
    %v580 = vpack.c.b16 %v544, %v541
    %v581 = vpack.c.b16 %v545, %v542
    %v582 = vpack.c.b16 %v546, %v543
    %v583 = vpack.c.b16 %v550, %v547
    %v584 = vpack.c.b16 %v551, %v548
    %v585 = vpack.c.b16 %v552, %v549
    %v586 = vpack.c.b16 %v556, %v553
    %v587 = vpack.c.b16 %v557, %v554
    %v588 = vpack.c.b16 %v558, %v555
    %v589 = vpack.c.b16 %v562, %v559
    %v590 = vpack.c.b16 %v563, %v560
    %v591 = vpack.c.b16 %v564, %v561
    %v592 = vpack.c.b16 %v568, %v565
    %v593 = vpack.c.b16 %v569, %v566
    %v594 = vpack.c.b16 %v570, %v567
    %619 = vmatprep.subr.bf16.mxu0 %v572
    %620 = vmatpush1.bf16.msra.mxu0 %v571
    %621 = vmatprep.subr.bf16.mxu0 %v575
    %622 = vmatpush1.bf16.msra.mxu0 %v574
    %623 = vmatprep.subr.bf16.mxu0 %v578
    %624 = vmatpush1.bf16.msra.mxu0 %v577
    %625 = vmatprep.subr.bf16.mxu0 %v581
    %626 = vmatpush1.bf16.msra.mxu0 %v580
    %627 = vmatprep.subr.bf16.mxu0 %v584
    %628 = vmatpush1.bf16.msra.mxu0 %v583
    %629 = vmatprep.subr.bf16.mxu0 %v587
    %630 = vmatpush1.bf16.msra.mxu0 %v586
    %631 = vmatprep.subr.bf16.mxu0 %v590
    %632 = vmatpush1.bf16.msra.mxu0 %v589
    %633 = vmatprep.subr.bf16.mxu0 %v593
    %634 = vmatpush1.bf16.msra.mxu0 %v592
    %635 = vmatprep.subr.bf16.mxu0 0
    %636 = vmatpush1.bf16.msra.mxu0 0
    %637 = vmatprep.subr.bf16.mxu0 0
    %638 = vmatpush1.bf16.msra.mxu0 0
    %639 = vmatprep.subr.bf16.mxu0 0
    %640 = vmatpush1.bf16.msra.mxu0 0
    %641 = vmatprep.subr.bf16.mxu0 0
    %642 = vmatpush1.bf16.msra.mxu0 0
    %643 = vmatprep.subr.bf16.mxu0 0
    %644 = vmatpush1.bf16.msra.mxu0 0
    %645 = vmatprep.subr.bf16.mxu0 0
    %646 = vmatpush1.bf16.msra.mxu0 0
    %647 = vmatprep.subr.bf16.mxu0 0
    %648 = vmatpush1.bf16.msra.mxu0 0
    %649 = vmatprep.subr.bf16.mxu0 0
    %650 = vmatpush1.bf16.msra.mxu0 0
    %651 = vmatprep.mubr.bf16.mxu0 0
    %652 = vmatmul.mubr.bf16.gmra.mrb[0].mxu0 %v457
    %v653 = vpop.f32.mrb[0].mxu0
    %v654 = vadd.f32 0.0, %v653
    %v655 = vpop.f32.mrb[0].mxu0
    %v656 = vadd.f32 0.0, %v655
    %v657 = vpop.f32.mrb[0].mxu0
    %v658 = vadd.f32 0.0, %v657
    %v659 = vpop.f32.mrb[0].mxu0
    %v660 = vadd.f32 0.0, %v659
    %661 = vmatprep.mubr.bf16.mxu0 0
    %662 = vmatmul.mubr.bf16.gmra.mrb[0].mxu0 %v458
    %v663 = vpop.f32.mrb[0].mxu0
    %v664 = vadd.f32 0.0, %v663
    %v665 = vpop.f32.mrb[0].mxu0
    %v666 = vadd.f32 0.0, %v665
    %v667 = vpop.f32.mrb[0].mxu0
    %v668 = vadd.f32 0.0, %v667
    %v669 = vpop.f32.mrb[0].mxu0
    %v670 = vadd.f32 0.0, %v669
    %671 = vdwg.mxu0
    %672 = vmatprep.subr.bf16.mxu0 0
    %673 = vmatpush1.bf16.msra.mxu0 %v573
    %674 = vmatprep.subr.bf16.mxu0 0
    %675 = vmatpush1.bf16.msra.mxu0 %v576
    %676 = vmatprep.subr.bf16.mxu0 0
    %677 = vmatpush1.bf16.msra.mxu0 %v579
    %678 = vmatprep.subr.bf16.mxu0 0
    %679 = vmatpush1.bf16.msra.mxu0 %v582
    %680 = vmatprep.subr.bf16.mxu0 0
    %681 = vmatpush1.bf16.msra.mxu0 %v585
    %682 = vmatprep.subr.bf16.mxu0 0
    %683 = vmatpush1.bf16.msra.mxu0 %v588
    %684 = vmatprep.subr.bf16.mxu0 0
    %685 = vmatpush1.bf16.msra.mxu0 %v591
    %686 = vmatprep.subr.bf16.mxu0 0
    %687 = vmatpush1.bf16.msra.mxu0 %v594
    %688 = vmatprep.subr.bf16.mxu0 0
    %689 = vmatpush1.bf16.msra.mxu0 0
    %690 = vmatprep.subr.bf16.mxu0 0
    %691 = vmatpush1.bf16.msra.mxu0 0
    %692 = vmatprep.subr.bf16.mxu0 0
    %693 = vmatpush1.bf16.msra.mxu0 0
    %694 = vmatprep.subr.bf16.mxu0 0
    %695 = vmatpush1.bf16.msra.mxu0 0
    %696 = vmatprep.subr.bf16.mxu0 0
    %697 = vmatpush1.bf16.msra.mxu0 0
    %698 = vmatprep.subr.bf16.mxu0 0
    %699 = vmatpush1.bf16.msra.mxu0 0
    %700 = vmatprep.subr.bf16.mxu0 0
    %701 = vmatpush1.bf16.msra.mxu0 0
    %702 = vmatprep.subr.bf16.mxu0 0
    %703 = vmatpush1.bf16.msra.mxu0 0
    %704 = vmatprep.mubr.bf16.mxu0 0
    %705 = vmatmul.mubr.bf16.gmra.mrb[0].mxu0 %v457
    %v706 = vpop.f32.mrb[0].mxu0
    %v707 = vadd.f32 0.0, %v706
    %v708 = vpop.f32.mrb[0].mxu0
    %v709 = vpop.f32.mrb[0].mxu0
    %v710 = vadd.f32 0.0, %v709
    %v711 = vpop.f32.mrb[0].mxu0
    %712 = vmatprep.mubr.bf16.mxu0 0
    %713 = vmatmul.mubr.bf16.gmra.mrb[0].mxu0 %v458
    %v714 = vpop.f32.mrb[0].mxu0
    %v715 = vadd.f32 0.0, %v714
    %v716 = vpop.f32.mrb[0].mxu0
    %v717 = vpop.f32.mrb[0].mxu0
    %v718 = vadd.f32 0.0, %v717
    %v719 = vpop.f32.mrb[0].mxu0
    %720 = vdwg.mxu0
    %v725 = vrot.slane %v654, 7
    %v726 = vrot.slane %v658, 7
    %v727 = vsel %vm396, %v725, %v726
    %v728 = vrot.slane %v664, 7
    %v729 = vsel %vm396, %v726, %v728
    %v730 = vrot.slane %v668, 7
    %v731 = vsel %vm396, %v728, %v730
    %v736 = vsel %vm396, 0.0, %v725
    %v737 = vsel %vm120, %v736, 0.0
    %v738 = vsel %vm121, %v727, 0.0
    %v739 = vsel %vm122, %v729, 0.0
    %v740 = vsel %vm123, %v731, 0.0
    %v745 = vrot.slane %v707, 1
    %v746 = vrot.slane %v710, 1
    %v747 = vsel %vm417, %v745, %v746
    %v748 = vrot.slane %v715, 1
    %v749 = vsel %vm417, %v746, %v748
    %v750 = vrot.slane %v718, 1
    %v751 = vsel %vm417, %v748, %v750
    %v756 = vsel %vm417, %v750, 0.0
    %v757 = vsel %vm124, %v747, 0.0
    %v758 = vsel %vm125, %v749, 0.0
    %v759 = vsel %vm126, %v751, 0.0
    %v760 = vsel %vm127, %v756, 0.0
    %v761 = vadd.f32 %v737, %v656
    %v762 = vadd.f32 %v738, %v660
    %v763 = vadd.f32 %v739, %v666
    %v764 = vadd.f32 %v740, %v670
    %v765 = vadd.f32 %v761, %v757
    %v766 = vadd.f32 %v762, %v758
    %v767 = vadd.f32 %v763, %v759
    %v768 = vadd.f32 %v764, %v760
    %v769 = vld [vmem:[%s4] sm:$0x1]
    %v771 = vlaneseq
    %v772 = vshrl.u32 %v771, 7
    %v773 = vsub.s32 0, %v772
    %v774 = vrot.slane %v769, %v773
    %v776 = vadd.f32 %v765, %v774
    %v777 = vadd.f32 %v766, %v774
    %v778 = vadd.f32 %v767, %v774
    %v779 = vadd.f32 %v768, %v774
    %v780 = vadd.f32 %v776, %v63
    %v781 = vadd.f32 %v777, %v64
    %v782 = vadd.f32 %v778, %v65
    %v783 = vadd.f32 %v779, %v66
    %v784 = vmax.f32 %v780, 0.0
    %v785 = vmax.f32 %v781, 0.0
    %v786 = vmax.f32 %v782, 0.0
    %v787 = vmax.f32 %v783, 0.0
    %788 = vst [vmem:[#allocation8] sm:$0xff] %v784
    %789 = vst [vmem:[#allocation8 + $0x8] sm:$0xff] %v785
    %790 = vst [vmem:[#allocation8 + $0x10] sm:$0xff] %v786
    %791 = vst [vmem:[#allocation8 + $0x18] sm:$0xff] %v787
    // Predicated region
    $region34: #{tpu_custom_call.1} parent=1 // pred_check
      _
    $region35: #{tpu_custom_call.1} parent=1 // pred_check_branch
      %793 = sbr.rel (0) target = $region37
    $region36: #{tpu_custom_call.1} parent=1 // pred_region
      %s795 = ssub.s32 512, 512
      %796 = vsyncadd [#allocation4], %s795
      %s797 = sshll.u32 [#allocation8], 4
      %s798 = int_to_ptr.vmem [resolvable:$true] %s797
      %803 = dma.vmem_to_hbm [thread:$0]  %s798, 512, %s5, [#allocation4], 128, 128, 8
    $region37: #{tpu_custom_call.1} parent=1 // pred_fallthru
      _
    // Predicated region
    $region38: #{tpu_custom_call.1} parent=1 // pred_check
      _
    $region39: #{tpu_custom_call.1} parent=1 // pred_check_branch
      %805 = sbr.rel (0) target = $region41
    $region40: #{tpu_custom_call.1} parent=1 // pred_region
      %806 = dma.done [#allocation4], 512
    $region41: #{tpu_custom_call.1} parent=1 // pred_fallthru
      _
    %807 = vsyncpa [#allocation3], 1
    %808 = vsyncpa [#allocation6], 1
    %809 = vsyncpa [#allocation4], 1

</llo_original>
